<compile_context>
chip_gen: v7x
topology: tpu7x:2x2x1
jax: 0.10.0
libtpu: 0.0.40
codegen_flags: <defaults>
</compile_context>

<pallas_src>
import math

import jax
import jax.numpy as jnp
from jax import lax
from jax.experimental import pallas as pl
from jax.experimental.pallas import tpu as pltpu


def _round_up(a, m):
    return (a + m - 1) // m * m


def _pick_tile(dim, unit, cap, lo=None):
    """Multiple of `unit` in [lo, cap] minimizing round-up padding of `dim`;
    ties broken toward the largest tile (bigger per-step DMA)."""
    if dim <= cap:
        return _round_up(dim, unit)
    lo = lo if lo is not None else unit
    best, best_key = None, None
    for c in range(lo, cap + 1, unit):
        key = (_round_up(dim, c) - dim, -c)   # (padding waste, prefer larger)
        if best_key is None or key < best_key:
            best_key, best = key, c
    return best


# ---------------------------------------------------------------------------
# Kernels
# ---------------------------------------------------------------------------

def _single_tile_kernel(x_ref, w_ref, b_ref, y_ref):
    """Whole problem in one tile: y = x @ W.T + b, f32 accumulation on the MXU."""
    acc = lax.dot_general(
        x_ref[...], w_ref[...],
        dimension_numbers=(((1,), (1,)), ((), ())),   # contract the in_dim axes
        preferred_element_type=jnp.float32,
    )
    y_ref[...] = (acc + b_ref[...].astype(jnp.float32)).astype(y_ref.dtype)


def _tiled_kernel_f32_out(x_ref, w_ref, b_ref, y_ref):
    """f32 output: accumulate directly into the resident output block (no scratch)."""
    k = pl.program_id(2)

    @pl.when(k == 0)
    def _():
        # Seed the accumulator with the bias -> bias added exactly once per (i, j).
        y_ref[...] = jnp.broadcast_to(b_ref[...].astype(jnp.float32), y_ref.shape)

    # Contract the shared last (in_dim) axis of x and W directly on the MXU;
    # equivalent to x @ W.T without materializing a transposed W tile.
    # TODO(synk): confirm in the Mosaic bundle dump that no per-tile vxpose of W
    # is emitted; if it is, pre-transpose W once outside the hot path instead.
    y_ref[...] += lax.dot_general(
        x_ref[...], w_ref[...],
        dimension_numbers=(((1,), (1,)), ((), ())),
        preferred_element_type=jnp.float32,
    )


def _tiled_kernel_acc(x_ref, w_ref, b_ref, y_ref, acc_ref):
    """Narrow output dtype: f32 VMEM scratch accumulator, cast at the final store."""
    k = pl.program_id(2)

    @pl.when(k == 0)
    def _():
        acc_ref[...] = jnp.zeros_like(acc_ref)

    acc_ref[...] += lax.dot_general(
        x_ref[...], w_ref[...],
        dimension_numbers=(((1,), (1,)), ((), ())),
        preferred_element_type=jnp.float32,
    )

    @pl.when(k == pl.num_programs(2) - 1)
    def _():
        y_ref[...] = (acc_ref[...] + b_ref[...].astype(jnp.float32)).astype(y_ref.dtype)


# ---------------------------------------------------------------------------
# Wrapper
# ---------------------------------------------------------------------------

_SINGLE_TILE_BYTES = 2 * 1024 * 1024   # fast-path cutoff on (x + W + y) bytes


def hebbian_linear(x, weight, bias, *, tm=None, tn=None, tk=None, out_dtype=None):
    """y[b, o] = sum_i weight[o, i] * x[b, i] + bias[o]   (HebbianLinear.forward).

    x / weight may be f32 or bf16 (cast parameters ONCE at creation time, not per
    call — a per-call astype would re-stream all of W through HBM). Accumulation
    is always f32.
    """
    B, in_dim = x.shape
    out_dim, in_dim_w = weight.shape
    assert in_dim == in_dim_w and bias.shape == (out_dim,)
    assert x.dtype == weight.dtype, "cast x / weight to a common dtype outside the hot path"
    out_dtype = jnp.dtype(out_dtype if out_dtype is not None else x.dtype)
    itemsize = jnp.dtype(weight.dtype).itemsize

    b2d = bias.reshape(1, out_dim)

    # ---- Fast path: whole problem in one tile (the module's typical 8x32x32
    # call). Full-array blocks, no padding, no grid, no scratch.
    total_bytes = (B * in_dim + out_dim * in_dim + B * out_dim) * itemsize
    if tm is None and tn is None and tk is None and total_bytes <= _SINGLE_TILE_BYTES:
        vmem = pl.BlockSpec(memory_space=pltpu.MemorySpace.VMEM)
        return pl.pallas_call(
            _single_tile_kernel,
            out_shape=jax.ShapeDtypeStruct((B, out_dim), out_dtype),
            in_specs=[vmem, vmem, vmem],
            out_specs=vmem,
        )(x, weight, b2d)

    # ---- Tiled (M, N, K) path --------------------------------------------
    # Keep the streamed W tile around ~2 MiB per grid step (the binding DMA).
    cap_n = 512 if itemsize >= 4 else 1024
    cap_k = 1024

    tm = tm or _pick_tile(B, 8, 256)
    tk = tk or _pick_tile(in_dim, 128, cap_k, lo=512)   # tk >= 512 whenever K is tiled
    if tn is None:
        tn = _pick_tile(out_dim, 128, cap_n)
        # Megacore: if the batch axis has only 1 program, split N so a "parallel"
        # axis has >= 2 programs (both v7x TCs) — only when it adds no padding.
        if _round_up(B, tm) // tm == 1 and out_dim > 128 and _round_up(out_dim, tn) // tn < 2:
            tn_half = max(128, (out_dim // 2) // 128 * 128)
            if _round_up(out_dim, tn_half) == _round_up(out_dim, 128):
                tn = tn_half

    B_p = _round_up(B, tm)
    N_p = _round_up(out_dim, tn)
    K_p = _round_up(in_dim, tk)

    # Zero padding is exact (padded K contributes 0; padded M/N rows are sliced
    # off). NOTE: for hot paths with non-aligned parameter shapes, pad W / bias
    # ONCE at parameter creation time — the per-call jnp.pad below is a full HBM
    # pass over W. Tile selection above already avoids padding for aligned shapes.
    x_p = x if (B_p == B and K_p == in_dim) else jnp.pad(
        x, ((0, B_p - B), (0, K_p - in_dim)))
    w_p = weight if (N_p == out_dim and K_p == in_dim) else jnp.pad(
        weight, ((0, N_p - out_dim), (0, K_p - in_dim)))
    b_p = b2d if N_p == out_dim else jnp.pad(b2d, ((0, 0), (0, N_p - out_dim)))

    grid = (B_p // tm, N_p // tn, K_p // tk)

    f32_out = out_dtype == jnp.dtype(jnp.float32)
    kernel = _tiled_kernel_f32_out if f32_out else _tiled_kernel_acc
    scratch = [] if f32_out else [pltpu.VMEM((tm, tn), jnp.float32)]

    # Advisory cost estimate: W is re-streamed once per M tile, x once per N tile.
    flops = 2 * B_p * N_p * K_p
    bytes_accessed = (grid[0] * w_p.size * itemsize
                      + grid[1] * x_p.size * itemsize
                      + B_p * N_p * out_dtype.itemsize
                      + b_p.size * jnp.dtype(b_p.dtype).itemsize)

    y_p = pl.pallas_call(
        kernel,
        out_shape=jax.ShapeDtypeStruct((B_p, N_p), out_dtype),
        grid_spec=pltpu.PrefetchScalarGridSpec(
            num_scalar_prefetch=0,
            grid=grid,
            in_specs=[
                pl.BlockSpec((tm, tk), lambda i, j, k: (i, k)),   # x tile
                pl.BlockSpec((tn, tk), lambda i, j, k: (j, k)),   # W tile (out, in)
                pl.BlockSpec((1, tn), lambda i, j, k: (0, j)),    # bias tile
            ],
            out_specs=pl.BlockSpec((tm, tn), lambda i, j, k: (i, j)),
            scratch_shapes=scratch,
        ),
        compiler_params=pltpu.CompilerParams(
            dimension_semantics=("parallel", "parallel", "arbitrary"),
        ),
        cost_estimate=pl.CostEstimate(
            flops=flops, transcendentals=0, bytes_accessed=bytes_accessed),
    )(x_p, w_p, b_p)

    if B_p == B and N_p == out_dim:
        return y_p
    return y_p[:B, :out_dim]


def xavier_normal(key, out_dim, in_dim, dtype=jnp.float32):
    # torch.nn.init.xavier_normal_: std = gain * sqrt(2 / (fan_in + fan_out)), gain=1
    std = math.sqrt(2.0 / (in_dim + out_dim))
    return (std * jax.random.normal(key, (out_dim, in_dim), dtype=jnp.float32)).astype(dtype)


if __name__ == "__main__":
    key = jax.random.PRNGKey(0)
    k1, k2, k3, k4, k5, k6 = jax.random.split(key, 6)

    # Case 1: the module's typical tiny call (B=8, 32 -> 32) -> single-tile fast path.
    B, in_dim, out_dim = 8, 32, 32
    x = jax.random.normal(k1, (B, in_dim), dtype=jnp.float32)
    w = xavier_normal(k2, out_dim, in_dim)
    b = jnp.zeros((out_dim,), dtype=jnp.float32)      # zeros_ init, as in the module
    y = hebbian_linear(x, w, b)
    jax.block_until_ready(y)
    y_ref = jnp.einsum("oi,bi->bo", w, x) + b
    assert y.shape == (B, out_dim)
    assert jnp.allclose(y, y_ref, atol=1e-5, rtol=1e-5)

    # Case 2: tiled (M, N, K) path with auto-selected tiles (tm=16, tn=512, tk=640
    # -> grid (1, 2, 2), zero padding, resident f32 output accumulator, no scratch).
    B2, in2, out2 = 16, 1280, 1024
    x2 = jax.random.normal(k3, (B2, in2), dtype=jnp.float32)
    w2 = xavier_normal(k4, out2, in2)
    b2 = jnp.zeros((out2,), dtype=jnp.float32)
    y2 = hebbian_linear(x2, w2, b2)
    jax.block_until_ready(y2)
    y2_ref = jnp.einsum("oi,bi->bo", w2, x2) + b2
    assert y2.shape == (B2, out2)
    assert jnp.allclose(y2, y2_ref, atol=5e-3, rtol=5e-3)

    # Case 3: bf16 parameters/activations (cast once at creation), f32 accumulation.
    B3, in3, out3 = 8, 256, 256
    x3 = jax.random.normal(k5, (B3, in3), dtype=jnp.float32).astype(jnp.bfloat16)
    w3 = xavier_normal(k6, out3, in3, dtype=jnp.bfloat16)
    b3 = jnp.zeros((out3,), dtype=jnp.bfloat16)
    y3 = hebbian_linear(x3, w3, b3)
    jax.block_until_ready(y3)
    y3_ref = jnp.einsum("oi,bi->bo", w3, x3) + b3
    assert y3.shape == (B3, out3)
    assert jnp.allclose(y3.astype(jnp.float32), y3_ref.astype(jnp.float32),
                        atol=2e-2, rtol=2e-2)

    print("KERNEL_OK")
</pallas_src>

<mosaic_0001>
module attributes {stable_mosaic.version = 11 : i64} {
  func.func @_single_tile_kernel(%arg0: memref<8x32xf32, #tpu.memory_space<vmem>>, %arg1: memref<32x32xf32, #tpu.memory_space<vmem>>, %arg2: memref<1x32xf32, #tpu.memory_space<vmem>>, %arg3: memref<8x32xf32, #tpu.memory_space<vmem>>) attributes {dimension_semantics = [], scalar_prefetch = 0 : i64, scratch_operands = 0 : i64, tpu.core_type = #tpu.core_type<tc>} {
    %c0 = arith.constant 0 : index
    %c0_0 = arith.constant 0 : index
    %0 = vector.load %arg0[%c0, %c0_0] : memref<8x32xf32, #tpu.memory_space<vmem>>, vector<8x32xf32>
    %c0_1 = arith.constant 0 : index
    %c0_2 = arith.constant 0 : index
    %1 = vector.load %arg1[%c0_1, %c0_2] : memref<32x32xf32, #tpu.memory_space<vmem>>, vector<32x32xf32>
    %cst = arith.constant dense<0.000000e+00> : vector<8x32xf32>
    %2 = tpu.matmul %0, %1, %cst {dimension_numbers = #tpu.dot_dimension_numbers<[1], [1], [0], [0], [0, 0, 1, 0], [], []>} : vector<8x32xf32>, vector<32x32xf32>, vector<8x32xf32> -> vector<8x32xf32>
    %c0_3 = arith.constant 0 : index
    %c0_4 = arith.constant 0 : index
    %3 = vector.load %arg2[%c0_3, %c0_4] : memref<1x32xf32, #tpu.memory_space<vmem>>, vector<1x32xf32>
    %4 = vector.broadcast %3 : vector<1x32xf32> to vector<8x32xf32>
    %5 = arith.addf %2, %4 : vector<8x32xf32>
    %c0_5 = arith.constant 0 : index
    %c0_6 = arith.constant 0 : index
    %6 = vector.load %arg3[%c0_5, %c0_6] : memref<8x32xf32, #tpu.memory_space<vmem>>, vector<8x32xf32>
    tpu.vector_store %arg3[%c0_5, %c0_6], %5 {strides = array<i32>} : memref<8x32xf32, #tpu.memory_space<vmem>>, vector<8x32xf32>,
    return
  }
}

</mosaic_0001>

<llo_original>
// kernel: tpu_custom_call.1
$region0: #{tpu_custom_call.1}
  #allocation0 [shape = 'u32[]', space=smem, size = 0x4, offset = 0x4, fixed_abs, tag = 'smem constant byte address 0x4 - core index']
  #allocation1 [shape = 'u32[144,128]{1,0:T(1,128)}', space=vmem, size = 0x12000, scoped, tag = 'internal scratch']
  %s0 = inlined_call_operand.hbm [shape: f32[8,32], index: 0, kind: input, shape index: {}]
  %s1 = inlined_call_operand.hbm [shape: f32[32,32], index: 1, kind: input, shape index: {}]
  %s2 = inlined_call_operand.vmem [shape: f32[1,32], index: 2, kind: input, shape index: {}]
  %s3 = inlined_call_operand.hbm [shape: f32[8,32], index: 3, kind: output, shape index: {}]
  %s4 = sld [smem:[#allocation0]]
  $region30: #{tpu_custom_call.1} parent=0
    _
  %s6 = ssub.s32 1, %s4
  %s7 = scalar_select 0, %s6, %s4
  $region1: #{tpu_custom_call.1} parent=0
    #allocation2 [shape = 'u8[4096]{0}', space=vmem, size = 0x1000, scoped, tag = 'input window, operand 0, single buffered']
    #allocation3 [shape = 's32[1]{0}', space=sflag, size = 0x4, scoped, tag = 'scoped memory for tpu_custom_call.1']
    #allocation4 [shape = 's32[1]{0}', space=sflag, size = 0x4, scoped, tag = 'scoped memory for tpu_custom_call.1']
    #allocation5 [shape = 'u8[16384]{0}', space=vmem, size = 0x4000, scoped, tag = 'input window, operand 1, single buffered']
    #allocation6 [shape = 's32[1]{0}', space=sflag, size = 0x4, scoped, tag = 'scoped memory for tpu_custom_call.1']
    #allocation7 [shape = 'u8[4096]{0}', space=vmem, size = 0x1000, scoped, tag = 'output window, operand 0, single buffered']
    %8 = vsyncpa [#allocation3], 0
    %9 = vsyncpa [#allocation6], 0
    %10 = vsyncpa [#allocation4], 0
    // Predicated region
    $region2: #{tpu_custom_call.1} parent=1 // pred_check
      _
    $region3: #{tpu_custom_call.1} parent=1 // pred_check_branch
      %12 = sbr.rel (0) target = $region5
    $region4: #{tpu_custom_call.1} parent=1 // pred_region
      %s14 = ssub.s32 128, 128
      %15 = vsyncadd [#allocation3], %s14
      %s17 = sshll.u32 [#allocation2], 4
      %s18 = int_to_ptr.vmem [resolvable:$true] %s17
      %20 = dma.hbm_to_vmem [thread:$0]  %s0, 128, %s18, [#allocation3]
    $region5: #{tpu_custom_call.1} parent=1 // pred_fallthru
      _
    // Predicated region
    $region6: #{tpu_custom_call.1} parent=1 // pred_check
      _
    $region7: #{tpu_custom_call.1} parent=1 // pred_check_branch
      %22 = sbr.rel (0) target = $region9
    $region8: #{tpu_custom_call.1} parent=1 // pred_region
      %s24 = ssub.s32 512, 512
      %25 = vsyncadd [#allocation6], %s24
      %s26 = sshll.u32 [#allocation5], 4
      %s27 = int_to_ptr.vmem [resolvable:$true] %s26
      %32 = dma.hbm_to_vmem [thread:$0]  %s1, 512, %s27, [#allocation6], 128, 128, 8
    $region9: #{tpu_custom_call.1} parent=1 // pred_fallthru
      _
    // Predicated region
    $region10: #{tpu_custom_call.1} parent=1 // pred_check
      _
    $region11: #{tpu_custom_call.1} parent=1 // pred_check_branch
      %34 = sbr.rel (0) target = $region13
    $region12: #{tpu_custom_call.1} parent=1 // pred_region
      _
    $region13: #{tpu_custom_call.1} parent=1 // pred_fallthru
      _
    // Predicated region
    $region14: #{tpu_custom_call.1} parent=1 // pred_check
      _
    $region15: #{tpu_custom_call.1} parent=1 // pred_check_branch
      %36 = sbr.rel (0) target = $region17
    $region16: #{tpu_custom_call.1} parent=1 // pred_region
      %37 = dma.done [#allocation3], 128
    $region17: #{tpu_custom_call.1} parent=1 // pred_fallthru
      _
    // Predicated region
    $region18: #{tpu_custom_call.1} parent=1 // pred_check
      _
    $region19: #{tpu_custom_call.1} parent=1 // pred_check_branch
      %39 = sbr.rel (0) target = $region21
    $region20: #{tpu_custom_call.1} parent=1 // pred_region
      %40 = dma.done [#allocation6], 512
    $region21: #{tpu_custom_call.1} parent=1 // pred_fallthru
      _
    %v41 = vld [vmem:[#allocation2] sm:$0xff]
    %v42 = vld [vmem:[#allocation5] sm:$0xff]
    %v43 = vld [vmem:[#allocation5 + $0x8] sm:$0xff]
    %v44 = vld [vmem:[#allocation5 + $0x10] sm:$0xff]
    %v45 = vld [vmem:[#allocation5 + $0x18] sm:$0xff]
    %v46 = vld [vmem:[%s2] sm:$0x1]
    %v48 = vlaneseq
    %v49 = vshrl.u32 %v48, 7
    %v50 = vsub.s32 0, %v49
    %v51 = vrot.slane %v46, %v50
    %vm53 = vcmask 261120
    %v55 = vsel %vm53, %v41, 0
    %v58 = vsel %vm53, %v42, 0
    %v61 = vsel %vm53, %v43, 0
    %v64 = vsel %vm53, %v44, 0
    %v67 = vsel %vm53, %v45, 0
    %69 = vmatprep.subr.mxu0 0.0
    %70 = vmatpush1.xpose.msra.mxu0 %v58
    %71 = vmatprep.subr.mxu0 0.0
    %72 = vmatpush1.xpose.msra.mxu0 %v61
    %73 = vmatprep.subr.mxu0 0.0
    %74 = vmatpush1.xpose.msra.mxu0 %v64
    %75 = vmatprep.subr.mxu0 0.0
    %76 = vmatpush1.xpose.msra.mxu0 %v67
    %77 = vmatprep.subr.mxu0 0.0
    %78 = vmatpush1.xpose.msra.mxu0 0.0
    %79 = vmatprep.subr.mxu0 0.0
    %80 = vmatpush1.xpose.msra.mxu0 0.0
    %81 = vmatprep.subr.mxu0 0.0
    %82 = vmatpush1.xpose.msra.mxu0 0.0
    %83 = vmatprep.subr.mxu0 0.0
    %84 = vmatpush1.xpose.msra.mxu0 0.0
    %85 = vmatprep.subr.mxu0 0.0
    %86 = vmatpush1.xpose.msra.mxu0 0.0
    %87 = vmatprep.subr.mxu0 0.0
    %88 = vmatpush1.xpose.msra.mxu0 0.0
    %89 = vmatprep.subr.mxu0 0.0
    %90 = vmatpush1.xpose.msra.mxu0 0.0
    %91 = vmatprep.subr.mxu0 0.0
    %92 = vmatpush1.xpose.msra.mxu0 0.0
    %93 = vmatprep.subr.mxu0 0.0
    %94 = vmatpush1.xpose.msra.mxu0 0.0
    %95 = vmatprep.subr.mxu0 0.0
    %96 = vmatpush1.xpose.msra.mxu0 0.0
    %97 = vmatprep.subr.mxu0 0.0
    %98 = vmatpush1.xpose.msra.mxu0 0.0
    %99 = vmatprep.subr.mxu0 0.0
    %100 = vmatpush1.xpose.msra.mxu0 0.0
    %101 = vmatprep.subr.mxu0 0.0
    %102 = vmatpush1.xpose.msra.mxu0 0.0
    %103 = vmatprep.subr.mxu0 0.0
    %104 = vmatpush1.xpose.msra.mxu0 0.0
    %105 = vmatprep.subr.mxu0 0.0
    %106 = vmatpush1.xpose.msra.mxu0 0.0
    %107 = vmatprep.subr.mxu0 0.0
    %108 = vmatpush1.xpose.msra.mxu0 0.0
    %109 = vmatprep.subr.mxu0 0.0
    %110 = vmatpush1.xpose.msra.mxu0 0.0
    %111 = vmatprep.subr.mxu0 0.0
    %112 = vmatpush1.xpose.msra.mxu0 0.0
    %113 = vmatprep.subr.mxu0 0.0
    %114 = vmatpush1.xpose.msra.mxu0 0.0
    %115 = vmatprep.subr.mxu0 0.0
    %116 = vmatpush1.xpose.msra.mxu0 0.0
    %117 = vmatprep.subr.mxu0 0.0
    %118 = vmatpush1.xpose.msra.mxu0 0.0
    %119 = vmatprep.subr.mxu0 0.0
    %120 = vmatpush1.xpose.msra.mxu0 0.0
    %121 = vmatprep.subr.mxu0 0.0
    %122 = vmatpush1.xpose.msra.mxu0 0.0
    %123 = vmatprep.subr.mxu0 0.0
    %124 = vmatpush1.xpose.msra.mxu0 0.0
    %125 = vmatprep.subr.mxu0 0.0
    %126 = vmatpush1.xpose.msra.mxu0 0.0
    %127 = vmatprep.subr.mxu0 0.0
    %128 = vmatpush1.xpose.msra.mxu0 0.0
    %129 = vmatprep.subr.mxu0 0.0
    %130 = vmatpush1.xpose.msra.mxu0 0.0
    %131 = vmatprep.subr.mxu0 0.0
    %132 = vmatpush1.xpose.msra.mxu0 0.0
    %133 = vmatprep.mubr.f32.mxu0 0.0
    %134 = vmatmul.mubr.f32.gmra.mrb[0].mxu0 %v55
    %v135 = vpop.f32.mrb[0].mxu0
    %v136 = vadd.f32 %v51, %v135
    %v137 = vpop.f32.mrb[0].mxu0
    %138 = vdwg.mxu0
    %139 = vst.msk [vmem:[#allocation7] sm:$0xff] %vm53, %v136
    // Predicated region
    $region22: #{tpu_custom_call.1} parent=1 // pred_check
      _
    $region23: #{tpu_custom_call.1} parent=1 // pred_check_branch
      %141 = sbr.rel (0) target = $region25
    $region24: #{tpu_custom_call.1} parent=1 // pred_region
      %s143 = ssub.s32 128, 128
      %144 = vsyncadd [#allocation4], %s143
      %s146 = sshll.u32 [#allocation7], 4
      %s147 = int_to_ptr.vmem [resolvable:$true] %s146
      %149 = dma.vmem_to_hbm [thread:$0]  %s147, 128, %s3, [#allocation4]
    $region25: #{tpu_custom_call.1} parent=1 // pred_fallthru
      _
    // Predicated region
    $region26: #{tpu_custom_call.1} parent=1 // pred_check
      _
    $region27: #{tpu_custom_call.1} parent=1 // pred_check_branch
      %151 = sbr.rel (0) target = $region29
    $region28: #{tpu_custom_call.1} parent=1 // pred_region
      %152 = dma.done [#allocation4], 128
    $region29: #{tpu_custom_call.1} parent=1 // pred_fallthru
      _
    %153 = vsyncpa [#allocation3], 1
    %154 = vsyncpa [#allocation6], 1
    %155 = vsyncpa [#allocation4], 1

</llo_original>
